<compile_context>
chip_gen: v7x
topology: tpu7x:2x2x1
jax: 0.10.0
libtpu: 0.0.40
codegen_flags: <defaults>
</compile_context>

<pallas_src>
import functools
import math

import jax
import jax.numpy as jnp
from jax import lax
from jax.experimental import pallas as pl
from jax.experimental.pallas import tpu as pltpu

_LANES = 128
_TARGET_BLOCK_BYTES = 2 << 20       # ~2 MiB per I/O block (overhead < ~10%)
_MIN_GRID_STEPS = 8                 # >= ~4 steps per TensorCore on v7x
_MAX_PACK_WIDTH = 512               # cap on p = lcm(C, 128) for packing


def _lcm(a, b):
    return a * b // math.gcd(a, b)


def _vmem_limit_bytes(block_in_bytes, block_f32_bytes):
    # in + out double-buffered (2x each) plus a few f32 block-sized
    # temporaries (x, xc, y-before-cast) + headroom.  Cap below v7x's 64 MiB
    # physical VMEM; the explicit raise past the 16 MiB default matters most
    # on v5e.
    need = 4 * block_in_bytes + 6 * block_f32_bytes + (4 << 20)
    return int(min(48 << 20, max(32 << 20, need)))


def _pick_row_tile(num_rows, row_bytes, target_bytes=_TARGET_BLOCK_BYTES):
    """Rows per block: big enough to hide the ~0.35us per-step overhead, but
    keep >= _MIN_GRID_STEPS steps for megacore sharding + DMA overlap."""
    row_bytes = max(int(row_bytes), 1)
    total_bytes = num_rows * row_bytes
    if total_bytes <= (1 << 20) or num_rows <= 16:
        return num_rows                              # one full-extent block
    tm = max(8, (target_bytes // row_bytes) // 8 * 8)
    cap = max(8, ((-(-num_rows // _MIN_GRID_STEPS)) + 7) // 8 * 8)
    tm = min(tm, cap)
    return min(tm, num_rows)


# ---------------------------------------------------------------------------
# Kernels
# ---------------------------------------------------------------------------
def _ln_rows_kernel(x_ref, w_ref, b_ref, o_ref, *, eps):
    # x_ref: (tm, C); w_ref/b_ref: (1, C) f32.  Normalize each row over C.
    # (Ragged tail rows compute on garbage but the masked store drops them.)
    x = x_ref[...].astype(jnp.float32)
    mean = jnp.mean(x, axis=-1, keepdims=True)
    xc = x - mean
    var = jnp.mean(xc * xc, axis=-1, keepdims=True)          # biased variance
    y = xc * lax.rsqrt(var + eps) * w_ref[...] + b_ref[...]
    o_ref[...] = y.astype(o_ref.dtype)


def _hilo_dot(v, m01):
    """v @ m01 with ~f32 accuracy: bf16 hi/lo split, f32 MXU accumulation.
    m01 is a 0/1 matrix, so each partial product is exact in bf16."""
    hi = v.astype(jnp.bfloat16)
    lo = (v - hi.astype(jnp.float32)).astype(jnp.bfloat16)
    return (jnp.dot(hi, m01, preferred_element_type=jnp.float32)
            + jnp.dot(lo, m01, preferred_element_type=jnp.float32))


def _ln_packed_kernel(x_ref, w_ref, b_ref, o_ref, *, c, k, eps):
    # x_ref: (tm, p) with p = k*c logical rows packed per lane-row.
    # w_ref / b_ref: (1, p) f32 = channel params tiled k times.
    p = c * k
    x = x_ref[...].astype(jnp.float32)

    # Segment membership matrices generated in-kernel (VALU filler is free in
    # this mem-bound kernel; avoids an HBM round trip + resident VMEM const).
    lane_dn = lax.broadcasted_iota(jnp.int32, (p, k), 0)
    seg_dn = lax.broadcasted_iota(jnp.int32, (p, k), 1)
    s_dn = ((lane_dn >= seg_dn * c) & (lane_dn < (seg_dn + 1) * c)
            ).astype(jnp.bfloat16)                   # (p, k) reduce matrix
    seg_up = lax.broadcasted_iota(jnp.int32, (k, p), 0)
    lane_up = lax.broadcasted_iota(jnp.int32, (k, p), 1)
    s_up = ((lane_up >= seg_up * c) & (lane_up < (seg_up + 1) * c)
            ).astype(jnp.bfloat16)                   # (k, p) broadcast matrix

    inv_c = jnp.float32(1.0 / c)

    def seg_mean(v):
        # Per-segment sum (tm, k), broadcast back to each segment's c lanes.
        return _hilo_dot(_hilo_dot(v, s_dn), s_up) * inv_c

    mean = seg_mean(x)
    xc = x - mean
    var = seg_mean(xc * xc)                          # biased variance
    y = xc * lax.rsqrt(var + eps) * w_ref[...] + b_ref[...]
    o_ref[...] = y.astype(o_ref.dtype)


def _ln_cfirst_kernel(x_ref, w_ref, b_ref, o_ref, *, eps):
    # x_ref: (tn, C, thw) -- normalize over the channel (sublane) axis.
    x = x_ref[...].astype(jnp.float32)
    mean = jnp.mean(x, axis=1, keepdims=True)
    xc = x - mean
    var = jnp.mean(xc * xc, axis=1, keepdims=True)            # biased variance
    y = xc * lax.rsqrt(var + eps) * w_ref[...] + b_ref[...]
    o_ref[...] = y.astype(o_ref.dtype)


# ---------------------------------------------------------------------------
# Wrappers
# ---------------------------------------------------------------------------
def _run_row_tiled(kernel, x2d, extras):
    m, w = x2d.shape
    tm = _pick_row_tile(m, w * x2d.dtype.itemsize)
    block_in = tm * w * x2d.dtype.itemsize
    block_f32 = tm * w * 4
    in_specs = [pl.BlockSpec((tm, w), lambda i: (i, 0))]
    in_specs += [pl.BlockSpec(e.shape, lambda i: (0, 0)) for e in extras]
    return pl.pallas_call(
        kernel,
        out_shape=jax.ShapeDtypeStruct((m, w), x2d.dtype),
        grid_spec=pltpu.PrefetchScalarGridSpec(
            num_scalar_prefetch=0,
            grid=(pl.cdiv(m, tm),),           # ragged tail is masked; no pad
            in_specs=in_specs,
            out_specs=pl.BlockSpec((tm, w), lambda i: (i, 0)),
        ),
        compiler_params=pltpu.CompilerParams(
            dimension_semantics=("parallel",),
            vmem_limit_bytes=_vmem_limit_bytes(block_in, block_f32)),
    )(x2d, *extras)


def layer_norm_channels_last(x, weight, bias, eps):
    c = x.shape[-1]
    m = 1
    for d in x.shape[:-1]:
        m *= d
    x2d = x.reshape(m, c)
    wf = weight.astype(jnp.float32).reshape(1, c)
    bf = bias.astype(jnp.float32).reshape(1, c)

    # Lane-dense packing: p = lcm(C, 128) lanes, k = p // C logical rows per
    # lane-row.  Covers C = 32, 48, 64, 96, 192, ...; C % 128 == 0 is already
    # lane-dense on the plain rows path.
    if c % _LANES != 0:
        p = _lcm(c, _LANES)
        k = p // c
        if p <= _MAX_PACK_WIDTH and k > 1 and m % k == 0:
            xp = x2d.reshape(m // k, p)            # free, contiguous reshape
            wp = jnp.tile(wf, (1, k))
            bp = jnp.tile(bf, (1, k))
            out = _run_row_tiled(
                functools.partial(_ln_packed_kernel, c=c, k=k, eps=eps),
                xp, (wp, bp))
            return out.reshape(x.shape)

    out = _run_row_tiled(
        functools.partial(_ln_rows_kernel, eps=eps), x2d, (wf, bf))
    return out.reshape(x.shape)


def layer_norm_channels_first(x, weight, bias, eps):
    n, c, h, w = x.shape
    hw = h * w
    x3 = x.reshape(n, c, hw)                       # no transpose passes
    wt = weight.astype(jnp.float32).reshape(1, c, 1)
    bs = bias.astype(jnp.float32).reshape(1, c, 1)
    itemsize = x.dtype.itemsize

    if hw >= _LANES:
        lane_budget = max(
            _LANES, (_TARGET_BLOCK_BYTES // (c * itemsize)) // _LANES * _LANES)
        thw = min(lane_budget, (hw // _LANES) * _LANES)
    else:
        thw = hw                                   # full extent (< 128 lanes)

    # Batch images per block when a single image slab is small; otherwise the
    # ~0.35us per-step overhead dwarfs the DMA time for 8-16 KiB blocks.
    per_img_bytes = c * thw * itemsize
    tn = int(min(n, max(1, _TARGET_BLOCK_BYTES // per_img_bytes)))
    total_bytes = n * c * hw * itemsize
    if total_bytes > (2 << 20):
        # Keep >= _MIN_GRID_STEPS grid steps for megacore + DMA overlap.
        hw_steps = -(-hw // thw)
        need_n_steps = max(1, -(-_MIN_GRID_STEPS // hw_steps))
        tn = min(tn, max(1, -(-n // need_n_steps)))

    block_in = tn * c * thw * itemsize
    block_f32 = tn * c * thw * 4

    out = pl.pallas_call(
        functools.partial(_ln_cfirst_kernel, eps=eps),
        out_shape=jax.ShapeDtypeStruct((n, c, hw), x.dtype),
        grid_spec=pltpu.PrefetchScalarGridSpec(
            num_scalar_prefetch=0,
            grid=(pl.cdiv(n, tn), pl.cdiv(hw, thw)),
            in_specs=[
                pl.BlockSpec((tn, c, thw), lambda i, j: (i, 0, j)),
                pl.BlockSpec((1, c, 1), lambda i, j: (0, 0, 0)),
                pl.BlockSpec((1, c, 1), lambda i, j: (0, 0, 0)),
            ],
            out_specs=pl.BlockSpec((tn, c, thw), lambda i, j: (i, 0, j)),
        ),
        compiler_params=pltpu.CompilerParams(
            dimension_semantics=("parallel", "parallel"),
            vmem_limit_bytes=_vmem_limit_bytes(block_in, block_f32)),
    )(x3, wt, bs)
    return out.reshape(n, c, h, w)


class LayerNormPallas:
    """Forward-only mirror of the PyTorch LayerNorm module."""

    def __init__(self, normalized_shape, eps=1e-6, data_format="channels_last",
                 weight=None, bias=None):
        if data_format not in ("channels_last", "channels_first"):
            raise NotImplementedError
        self.eps = float(eps)
        self.data_format = data_format
        self.normalized_shape = (normalized_shape,)
        self.weight = (jnp.ones((normalized_shape,), jnp.float32)
                       if weight is None else jnp.asarray(weight, jnp.float32))
        self.bias = (jnp.zeros((normalized_shape,), jnp.float32)
                     if bias is None else jnp.asarray(bias, jnp.float32))

    def __call__(self, x):
        c = self.normalized_shape[0]
        if self.data_format == "channels_last":
            assert x.shape[-1] == c
            return layer_norm_channels_last(x, self.weight, self.bias, self.eps)
        assert x.shape[1] == c
        return layer_norm_channels_first(x, self.weight, self.bias, self.eps)


# ---------------------------------------------------------------------------
# References + test
# ---------------------------------------------------------------------------
def _ref_channels_last(x, w, b, eps):
    mean = jnp.mean(x, axis=-1, keepdims=True)
    var = jnp.mean((x - mean) ** 2, axis=-1, keepdims=True)
    return (x - mean) / jnp.sqrt(var + eps) * w + b


def _ref_channels_first(x, w, b, eps):
    u = jnp.mean(x, axis=1, keepdims=True)
    s = jnp.mean((x - u) ** 2, axis=1, keepdims=True)
    xn = (x - u) / jnp.sqrt(s + eps)
    return w[None, :, None, None] * xn + b[None, :, None, None]


if __name__ == "__main__":
    key = jax.random.PRNGKey(0)
    k1, k2, k3, k4, k5, k6, k7 = jax.random.split(key, 7)

    C = 32
    eps = 1e-6
    weight = 1.0 + 0.1 * jax.random.normal(k3, (C,), jnp.float32)
    bias = 0.1 * jax.random.normal(k4, (C,), jnp.float32)

    # channels_first: NCHW, HW < 128 (full-extent lane block, N-tiled)
    x_cf = jax.random.normal(k1, (2, C, 8, 8), jnp.float32)
    ln_cf = LayerNormPallas(C, eps=eps, data_format="channels_first",
                            weight=weight, bias=bias)
    y_cf = jax.block_until_ready(ln_cf(x_cf))
    ref_cf = _ref_channels_first(x_cf, weight, bias, eps)
    assert y_cf.shape == x_cf.shape
    assert float(jnp.max(jnp.abs(y_cf - ref_cf))) < 1e-4

    # channels_first: NCHW, HW >= 128 (lane-tiled path)
    x_cf2 = jax.random.normal(k2, (1, C, 16, 16), jnp.float32)
    y_cf2 = jax.block_until_ready(ln_cf(x_cf2))
    ref_cf2 = _ref_channels_first(x_cf2, weight, bias, eps)
    assert float(jnp.max(jnp.abs(y_cf2 - ref_cf2))) < 1e-4

    # channels_last: NHWC, C=32 -> lane-packed kernel (4 rows per 128 lanes)
    x_cl = jax.random.normal(k5, (2, 8, 8, C), jnp.float32)
    ln_cl = LayerNormPallas(C, eps=eps, data_format="channels_last",
                            weight=weight, bias=bias)
    y_cl = jax.block_until_ready(ln_cl(x_cl))
    ref_cl = _ref_channels_last(x_cl, weight, bias, eps)
    assert y_cl.shape == x_cl.shape
    assert float(jnp.max(jnp.abs(y_cl - ref_cl))) < 1e-4

    # channels_last: larger input -> multi-step grid (pipelined blocks)
    x_big = jax.random.normal(k7, (8, 32, 32, C), jnp.float32)
    y_big = jax.block_until_ready(ln_cl(x_big))
    ref_big = _ref_channels_last(x_big, weight, bias, eps)
    assert float(jnp.max(jnp.abs(y_big - ref_big))) < 1e-4

    # channels_last with C=48 -> LCM packing: p = lcm(48,128) = 384, k = 8
    C2 = 48
    w2 = 1.0 + 0.1 * jax.random.normal(k6, (C2,), jnp.float32)
    b2 = 0.1 * jax.random.normal(k3, (C2,), jnp.float32)
    x2 = jax.random.normal(k4, (2, 4, 4, C2), jnp.float32)
    ln2 = LayerNormPallas(C2, eps=eps, data_format="channels_last",
                          weight=w2, bias=b2)
    y2 = jax.block_until_ready(ln2(x2))
    ref2 = _ref_channels_last(x2, w2, b2, eps)
    assert float(jnp.max(jnp.abs(y2 - ref2))) < 1e-4

    print("KERNEL_OK")
</pallas_src>

<mosaic_0001>
module attributes {stable_mosaic.version = 11 : i64} {
  func.func @_ln_cfirst_kernel(%arg0: i32, %arg1: i32, %arg2: memref<2x32x64xf32, #tpu.memory_space<vmem>>, %arg3: memref<1x32x1xf32, #tpu.memory_space<vmem>>, %arg4: memref<1x32x1xf32, #tpu.memory_space<vmem>>, %arg5: memref<2x32x64xf32, #tpu.memory_space<vmem>>) attributes {dimension_semantics = [#tpu.dimension_semantics<parallel>, #tpu.dimension_semantics<parallel>], iteration_bounds = array<i64: 1, 1>, scalar_prefetch = 0 : i64, scratch_operands = 0 : i64, tpu.core_type = #tpu.core_type<tc>, window_params = [{transform_indices = @transform_0, window_bounds = array<i64: 2, 32, 64>}, {pipeline_mode = #tpu.pipeline_mode<synchronous>, transform_indices = @transform_1, window_bounds = array<i64: 1, 32, 1>}, {pipeline_mode = #tpu.pipeline_mode<synchronous>, transform_indices = @transform_2, window_bounds = array<i64: 1, 32, 1>}, {transform_indices = @transform_3, window_bounds = array<i64: 2, 32, 64>}]} {
    %c0 = arith.constant 0 : index
    %c0_0 = arith.constant 0 : index
    %c0_1 = arith.constant 0 : index
    %0 = vector.load %arg2[%c0, %c0_0, %c0_1] : memref<2x32x64xf32, #tpu.memory_space<vmem>>, vector<2x32x64xf32>
    %cst = arith.constant dense<0.000000e+00> : vector<2x64xf32>
    %1 = vector.multi_reduction <add>, %0, %cst [1] : vector<2x32x64xf32> to vector<2x64xf32>
    %2 = vector.shape_cast %1 : vector<2x64xf32> to vector<2x1x64xf32>
    %cst_2 = arith.constant 3.200000e+01 : f32
    %3 = vector.broadcast %cst_2 : f32 to vector<2x1x64xf32>
    %4 = arith.divf %2, %3 : vector<2x1x64xf32>
    %5 = vector.broadcast %4 : vector<2x1x64xf32> to vector<2x32x64xf32>
    %6 = arith.subf %0, %5 : vector<2x32x64xf32>
    %7 = arith.mulf %6, %6 : vector<2x32x64xf32>
    %cst_3 = arith.constant dense<0.000000e+00> : vector<2x64xf32>
    %8 = vector.multi_reduction <add>, %7, %cst_3 [1] : vector<2x32x64xf32> to vector<2x64xf32>
    %9 = vector.shape_cast %8 : vector<2x64xf32> to vector<2x1x64xf32>
    %cst_4 = arith.constant 3.200000e+01 : f32
    %10 = vector.broadcast %cst_4 : f32 to vector<2x1x64xf32>
    %11 = arith.divf %9, %10 : vector<2x1x64xf32>
    %cst_5 = arith.constant 9.99999997E-7 : f32
    %12 = vector.broadcast %cst_5 : f32 to vector<2x1x64xf32>
    %13 = arith.addf %11, %12 : vector<2x1x64xf32>
    %14 = math.rsqrt %13 : vector<2x1x64xf32>
    %15 = vector.broadcast %14 : vector<2x1x64xf32> to vector<2x32x64xf32>
    %16 = arith.mulf %6, %15 : vector<2x32x64xf32>
    %c0_6 = arith.constant 0 : index
    %c0_7 = arith.constant 0 : index
    %c0_8 = arith.constant 0 : index
    %17 = vector.load %arg3[%c0_6, %c0_7, %c0_8] : memref<1x32x1xf32, #tpu.memory_space<vmem>>, vector<1x32x1xf32>
    %18 = vector.broadcast %17 : vector<1x32x1xf32> to vector<2x32x64xf32>
    %19 = arith.mulf %16, %18 : vector<2x32x64xf32>
    %c0_9 = arith.constant 0 : index
    %c0_10 = arith.constant 0 : index
    %c0_11 = arith.constant 0 : index
    %20 = vector.load %arg4[%c0_9, %c0_10, %c0_11] : memref<1x32x1xf32, #tpu.memory_space<vmem>>, vector<1x32x1xf32>
    %21 = vector.broadcast %20 : vector<1x32x1xf32> to vector<2x32x64xf32>
    %22 = arith.addf %19, %21 : vector<2x32x64xf32>
    %c0_12 = arith.constant 0 : index
    %c0_13 = arith.constant 0 : index
    %c0_14 = arith.constant 0 : index
    %23 = vector.load %arg5[%c0_12, %c0_13, %c0_14] : memref<2x32x64xf32, #tpu.memory_space<vmem>>, vector<2x32x64xf32>
    tpu.vector_store %arg5[%c0_12, %c0_13, %c0_14], %22 {strides = array<i32>} : memref<2x32x64xf32, #tpu.memory_space<vmem>>, vector<2x32x64xf32>,
    return
  }
  func.func @transform_0(%arg0: i32, %arg1: i32) -> (i32, i32, i32) {
    %c0_i32 = arith.constant 0 : i32
    %c0_i32_0 = arith.constant 0 : i32
    return %arg0, %c0_i32, %arg1 : i32, i32, i32
  }
  func.func @transform_1(%arg0: i32, %arg1: i32) -> (i32, i32, i32) {
    %c0_i32 = arith.constant 0 : i32
    %c0_i32_0 = arith.constant 0 : i32
    %c0_i32_1 = arith.constant 0 : i32
    %c0_i32_2 = arith.constant 0 : i32
    return %c0_i32, %c0_i32_0, %c0_i32_1 : i32, i32, i32
  }
  func.func @transform_2(%arg0: i32, %arg1: i32) -> (i32, i32, i32) {
    %c0_i32 = arith.constant 0 : i32
    %c0_i32_0 = arith.constant 0 : i32
    %c0_i32_1 = arith.constant 0 : i32
    %c0_i32_2 = arith.constant 0 : i32
    return %c0_i32, %c0_i32_0, %c0_i32_1 : i32, i32, i32
  }
  func.func @transform_3(%arg0: i32, %arg1: i32) -> (i32, i32, i32) {
    %c0_i32 = arith.constant 0 : i32
    %c0_i32_0 = arith.constant 0 : i32
    return %arg0, %c0_i32, %arg1 : i32, i32, i32
  }
}

</mosaic_0001>

<llo_original>
// kernel: tpu_custom_call.1
$region0: #{tpu_custom_call.1}
  #allocation0 [shape = 'u32[]', space=smem, size = 0x4, offset = 0x4, fixed_abs, tag = 'smem constant byte address 0x4 - core index']
  #allocation1 [shape = 'u32[144,128]{1,0:T(1,128)}', space=vmem, size = 0x12000, scoped, tag = 'internal scratch']
  %s0 = inlined_call_operand.vmem [shape: f32[2,32,64], index: 0, kind: input, shape index: {}]
  %s1 = inlined_call_operand.vmem [shape: f32[1,32,1], index: 1, kind: input, shape index: {}]
  %s2 = inlined_call_operand.vmem [shape: f32[1,32,1], index: 2, kind: input, shape index: {}]
  %s3 = inlined_call_operand.hbm [shape: f32[2,32,64], index: 3, kind: output, shape index: {}]
  %s4 = sld [smem:[#allocation0]]
  $region22: #{tpu_custom_call.1} parent=0
    _
  %s6 = ssub.s32 1, %s4
  %s7 = scalar_select 0, %s6, %s4
  $region1: #{tpu_custom_call.1} parent=0
    #allocation2 [shape = 'u8[32768]{0}', space=vmem, size = 0x8000, scoped, tag = 'output window, operand 0, single buffered']
    #allocation3 [shape = 's32[1]{0}', space=sflag, size = 0x4, scoped, tag = 'scoped memory for tpu_custom_call.1']
    %8 = vsyncpa [#allocation3], 0
    // Predicated region
    $region2: #{tpu_custom_call.1} parent=1 // pred_check
      _
    $region3: #{tpu_custom_call.1} parent=1 // pred_check_branch
      %10 = sbr.rel (0) target = $region5
    $region4: #{tpu_custom_call.1} parent=1 // pred_region
      _
    $region5: #{tpu_custom_call.1} parent=1 // pred_fallthru
      _
    // Predicated region
    $region6: #{tpu_custom_call.1} parent=1 // pred_check
      _
    $region7: #{tpu_custom_call.1} parent=1 // pred_check_branch
      %12 = sbr.rel (0) target = $region9
    $region8: #{tpu_custom_call.1} parent=1 // pred_region
      _
    $region9: #{tpu_custom_call.1} parent=1 // pred_fallthru
      _
    // Predicated region
    $region10: #{tpu_custom_call.1} parent=1 // pred_check
      _
    $region11: #{tpu_custom_call.1} parent=1 // pred_check_branch
      %14 = sbr.rel (0) target = $region13
    $region12: #{tpu_custom_call.1} parent=1 // pred_region
      _
    $region13: #{tpu_custom_call.1} parent=1 // pred_fallthru
      _
    %v15 = vld [vmem:[%s0] sm:$0xff]
    %v16 = vld [vmem:[%s0 + $0x8] sm:$0xff]
    %v17 = vld [vmem:[%s0 + $0x10] sm:$0xff]
    %v18 = vld [vmem:[%s0 + $0x18] sm:$0xff]
    %v19 = vld [vmem:[%s0 + $0x20] sm:$0xff]
    %v20 = vld [vmem:[%s0 + $0x28] sm:$0xff]
    %v21 = vld [vmem:[%s0 + $0x30] sm:$0xff]
    %v22 = vld [vmem:[%s0 + $0x38] sm:$0xff]
    %vm23 = vcmask 523264
    %v24 = vsel %vm23, %v15, 0.0
    %v25 = vsel %vm23, %v16, 0.0
    %v26 = vadd.f32 %v24, %v25
    %v27 = vsel %vm23, %v17, 0.0
    %v28 = vadd.f32 %v26, %v27
    %v29 = vsel %vm23, %v18, 0.0
    %v30 = vadd.f32 %v28, %v29
    %v31 = vrot.slane %v30, 4
    %v32 = vadd.f32 %v30, %v31
    %v33 = vrot.slane %v32, 2
    %v34 = vadd.f32 %v32, %v33
    %v35 = vrot.slane %v34, 1
    %v36 = vadd.f32 %v34, %v35
    %v37 = vsel %vm23, %v19, 0.0
    %v38 = vsel %vm23, %v20, 0.0
    %v39 = vadd.f32 %v37, %v38
    %v40 = vsel %vm23, %v21, 0.0
    %v41 = vadd.f32 %v39, %v40
    %v42 = vsel %vm23, %v22, 0.0
    %v43 = vadd.f32 %v41, %v42
    %v44 = vrot.slane %v43, 4
    %v45 = vadd.f32 %v43, %v44
    %v46 = vrot.slane %v45, 2
    %v47 = vadd.f32 %v45, %v46
    %v48 = vrot.slane %v47, 1
    %v49 = vadd.f32 %v47, %v48
    %v50 = vrcp.pop 32.0
    %v51 = vmul.f32 %v36, %v50
    %v52 = vmul.f32 %v49, %v50
    %v53 = vsub.f32 %v15, %v51
    %v54 = vsub.f32 %v16, %v51
    %v55 = vsub.f32 %v17, %v51
    %v56 = vsub.f32 %v18, %v51
    %v57 = vsub.f32 %v19, %v52
    %v58 = vsub.f32 %v20, %v52
    %v59 = vsub.f32 %v21, %v52
    %v60 = vsub.f32 %v22, %v52
    %v61 = vmul.f32 %v53, %v53
    %v62 = vmul.f32 %v54, %v54
    %v63 = vmul.f32 %v55, %v55
    %v64 = vmul.f32 %v56, %v56
    %v65 = vmul.f32 %v57, %v57
    %v66 = vmul.f32 %v58, %v58
    %v67 = vmul.f32 %v59, %v59
    %v68 = vmul.f32 %v60, %v60
    %v69 = vsel %vm23, %v61, 0.0
    %v70 = vsel %vm23, %v62, 0.0
    %v71 = vadd.f32 %v69, %v70
    %v72 = vsel %vm23, %v63, 0.0
    %v73 = vadd.f32 %v71, %v72
    %v74 = vsel %vm23, %v64, 0.0
    %v75 = vadd.f32 %v73, %v74
    %v76 = vrot.slane %v75, 4
    %v77 = vadd.f32 %v75, %v76
    %v78 = vrot.slane %v77, 2
    %v79 = vadd.f32 %v77, %v78
    %v80 = vrot.slane %v79, 1
    %v81 = vadd.f32 %v79, %v80
    %v82 = vsel %vm23, %v65, 0.0
    %v83 = vsel %vm23, %v66, 0.0
    %v84 = vadd.f32 %v82, %v83
    %v85 = vsel %vm23, %v67, 0.0
    %v86 = vadd.f32 %v84, %v85
    %v87 = vsel %vm23, %v68, 0.0
    %v88 = vadd.f32 %v86, %v87
    %v89 = vrot.slane %v88, 4
    %v90 = vadd.f32 %v88, %v89
    %v91 = vrot.slane %v90, 2
    %v92 = vadd.f32 %v90, %v91
    %v93 = vrot.slane %v92, 1
    %v94 = vadd.f32 %v92, %v93
    %v95 = vmul.f32 %v81, %v50
    %v96 = vmul.f32 %v94, %v50
    %v97 = vadd.f32 %v95, 1e-06
    %v98 = vadd.f32 %v96, 1e-06
    %v99 = vrsqrt.pop %v97
    %v100 = vrsqrt.pop %v98
    %v101 = vmul.f32 %v53, %v99
    %v102 = vmul.f32 %v54, %v99
    %v103 = vmul.f32 %v55, %v99
    %v104 = vmul.f32 %v56, %v99
    %v105 = vmul.f32 %v57, %v100
    %v106 = vmul.f32 %v58, %v100
    %v107 = vmul.f32 %v59, %v100
    %v108 = vmul.f32 %v60, %v100
    %v109 = vld [vmem:[%s1] sm:$0xff]
    %v110 = vld [vmem:[%s1 + $0x8] sm:$0xff]
    %v111 = vld [vmem:[%s1 + $0x10] sm:$0xff]
    %v112 = vld [vmem:[%s1 + $0x18] sm:$0xff]
    %114 = vset.pattern.permute.xlu0 0
    %115 = vperm.xlu0 %114, %v109
    %v116 = vpop.permute.xlu0 %115
    %119 = vset.pattern.permute.xlu0 0
    %120 = vperm.xlu0 %119, %v110
    %v121 = vpop.permute.xlu0 %120
    %124 = vset.pattern.permute.xlu0 0
    %125 = vperm.xlu0 %124, %v111
    %v126 = vpop.permute.xlu0 %125
    %129 = vset.pattern.permute.xlu0 0
    %130 = vperm.xlu0 %129, %v112
    %v131 = vpop.permute.xlu0 %130
    %v133 = vmul.f32 %v101, %v116
    %v134 = vmul.f32 %v102, %v121
    %v135 = vmul.f32 %v103, %v126
    %v136 = vmul.f32 %v104, %v131
    %v137 = vmul.f32 %v105, %v116
    %v138 = vmul.f32 %v106, %v121
    %v139 = vmul.f32 %v107, %v126
    %v140 = vmul.f32 %v108, %v131
    %v141 = vld [vmem:[%s2] sm:$0xff]
    %v142 = vld [vmem:[%s2 + $0x8] sm:$0xff]
    %v143 = vld [vmem:[%s2 + $0x10] sm:$0xff]
    %v144 = vld [vmem:[%s2 + $0x18] sm:$0xff]
    %146 = vset.pattern.permute.xlu0 0
    %147 = vperm.xlu0 %146, %v141
    %v148 = vpop.permute.xlu0 %147
    %151 = vset.pattern.permute.xlu0 0
    %152 = vperm.xlu0 %151, %v142
    %v153 = vpop.permute.xlu0 %152
    %156 = vset.pattern.permute.xlu0 0
    %157 = vperm.xlu0 %156, %v143
    %v158 = vpop.permute.xlu0 %157
    %161 = vset.pattern.permute.xlu0 0
    %162 = vperm.xlu0 %161, %v144
    %v163 = vpop.permute.xlu0 %162
    %v165 = vadd.f32 %v133, %v148
    %v166 = vadd.f32 %v134, %v153
    %v167 = vadd.f32 %v135, %v158
    %v168 = vadd.f32 %v136, %v163
    %v169 = vadd.f32 %v137, %v148
    %v170 = vadd.f32 %v138, %v153
    %v171 = vadd.f32 %v139, %v158
    %v172 = vadd.f32 %v140, %v163
    %173 = vst.msk [vmem:[#allocation2] sm:$0xff] %vm23, %v165
    %174 = vst.msk [vmem:[#allocation2 + $0x8] sm:$0xff] %vm23, %v166
    %175 = vst.msk [vmem:[#allocation2 + $0x10] sm:$0xff] %vm23, %v167
    %176 = vst.msk [vmem:[#allocation2 + $0x18] sm:$0xff] %vm23, %v168
    %177 = vst.msk [vmem:[#allocation2 + $0x20] sm:$0xff] %vm23, %v169
    %178 = vst.msk [vmem:[#allocation2 + $0x28] sm:$0xff] %vm23, %v170
    %179 = vst.msk [vmem:[#allocation2 + $0x30] sm:$0xff] %vm23, %v171
    %180 = vst.msk [vmem:[#allocation2 + $0x38] sm:$0xff] %vm23, %v172
    // Predicated region
    $region14: #{tpu_custom_call.1} parent=1 // pred_check
      _
    $region15: #{tpu_custom_call.1} parent=1 // pred_check_branch
      %182 = sbr.rel (0) target = $region17
    $region16: #{tpu_custom_call.1} parent=1 // pred_region
      %s184 = ssub.s32 1024, 1024
      %185 = vsyncadd [#allocation3], %s184
      %s186 = sshll.u32 [#allocation2], 4
      %s187 = int_to_ptr.vmem [resolvable:$true] %s186
      %192 = dma.vmem_to_hbm [thread:$0]  %s187, 1024, %s3, [#allocation3], 128, 128, 8
    $region17: #{tpu_custom_call.1} parent=1 // pred_fallthru
      _
    // Predicated region
    $region18: #{tpu_custom_call.1} parent=1 // pred_check
      _
    $region19: #{tpu_custom_call.1} parent=1 // pred_check_branch
      %194 = sbr.rel (0) target = $region21
    $region20: #{tpu_custom_call.1} parent=1 // pred_region
      %195 = dma.done [#allocation3], 1024
    $region21: #{tpu_custom_call.1} parent=1 // pred_fallthru
      _
    %196 = vsyncpa [#allocation3], 1

</llo_original>
